<compile_context>
chip_gen: v6e
topology: v6e:2x2x1
jax: 0.10.0
libtpu: 0.0.40
codegen_flags: <defaults>
</compile_context>

<pallas_src>
import functools

import jax
import jax.numpy as jnp
from jax.experimental import pallas as pl
from jax.experimental.pallas import tpu as pltpu


def _int_pow(x, n):
    """x**n for positive integer n via square-and-multiply (unrolled at trace time)."""
    result = None
    base = x
    while n > 0:
        if n & 1:
            result = base if result is None else result * base
        n >>= 1
        if n:
            base = base * base
    return result


def _pow_math(x, exponent, *, in_kernel):
    """x ** exponent in float32, shared between the kernel and the tail path."""
    if isinstance(exponent, int):
        if exponent == 0:
            return jnp.ones_like(x)
        if exponent == 2:
            # FloatFunctional.mul(input, input) hot path.
            return x * x
        if exponent > 0:
            # SegmentLUT(pow) path, exact for positive integer exponents.
            return _int_pow(x, exponent)
        # Negative integer exponent: exact reciprocal of the positive power
        # (keeps sign, no transcendentals).
        denom = _int_pow(x, -exponent)
        if in_kernel:
            return pl.reciprocal(denom, approx=False)
        return 1.0 / denom
    # Non-integer exponent.
    # TODO(synk): SegmentLUT piecewise-linear approximation details are not
    # reproduced; we compute the exact math function instead.
    p = float(exponent)
    mag = jnp.exp(p * jnp.log(jnp.abs(x)))  # |x|**p ; x==0 -> 0 (p>0) / inf (p<0)
    # Non-integer exponent with negative base -> NaN (matches torch.pow).
    return jnp.where(x < 0, jnp.float32(jnp.nan), mag)


def _fake_quant(y, scale, inv_scale):
    """Output fake-quantize (qconfig activation fake-quant, symmetric int8)."""
    # TODO(synk): clip range assumed [-128, 127]; some qconfigs use [-127, 127].
    q = jnp.clip(jnp.round(y * inv_scale), -128.0, 127.0)
    return q * scale


def _pow_kernel(x_ref, o_ref, *, exponent, scale, inv_scale):
    """Elementwise x**exponent followed by int8 symmetric fake-quant.

    x_ref / o_ref : VMEM (tile_rows, lanes) tiles.
    exponent, scale, inv_scale are compile-time Python constants.
    """
    x = x_ref[...].astype(jnp.float32)
    y = _pow_math(x, exponent, in_kernel=True)
    o_ref[...] = _fake_quant(y, scale, inv_scale).astype(o_ref.dtype)


def _qat_pow_lane_aligned(flat, exponent, scale, inv_scale, max_block_bytes):
    """Run the Pallas kernel on a flat array whose length is a multiple of 128."""
    total = flat.shape[0]

    # Widest lane-dense layout that divides the element count (unmasked vst).
    lanes = 128
    for cand in (1024, 512, 256):
        if total % cand == 0:
            lanes = cand
            break
    rows = total // lanes
    x2d = flat.reshape(rows, lanes)

    # Row-block sizing: ~max_block_bytes per buffer (double-buffered in+out -> 4x
    # in VMEM, ~16 MiB at the 4 MiB default — within the explicit 32 MiB limit).
    dtype_bytes = jnp.dtype(x2d.dtype).itemsize
    target_rows = max(8, (max_block_bytes // (lanes * dtype_bytes)) // 8 * 8)
    if rows > 8:
        # Ensure >= 2 grid blocks so the parallel axis can shard across both
        # v7x TensorCores; Pallas masks the ragged last block (multiple of 8).
        half_rows = max(8, (rows // 2) // 8 * 8)
        tile_rows = min(target_rows, half_rows)
    else:
        tile_rows = rows  # single block equal to the full dim: always legal

    grid = (pl.cdiv(rows, tile_rows),)

    kernel = functools.partial(
        _pow_kernel, exponent=exponent, scale=scale, inv_scale=inv_scale
    )

    out2d = pl.pallas_call(
        kernel,
        out_shape=jax.ShapeDtypeStruct((rows, lanes), flat.dtype),
        grid_spec=pl.GridSpec(
            grid=grid,
            in_specs=[pl.BlockSpec((tile_rows, lanes), lambda i: (i, 0))],
            out_specs=pl.BlockSpec((tile_rows, lanes), lambda i: (i, 0)),
        ),
        compiler_params=pltpu.CompilerParams(
            dimension_semantics=("parallel",),  # megacore sharding on v7x
            vmem_limit_bytes=32 * 1024 * 1024,
        ),
    )(x2d)

    return out2d.reshape(-1)


def qat_pow(x_nchw, exponent, scale, *, max_block_bytes=4 << 20):
    """x_nchw: float array (any shape).  Returns fake-quantized x**exponent, same shape."""
    # Normalize exponent the same way the torch module does (int if integral).
    if not isinstance(exponent, int):
        e = float(exponent)
        exponent = int(e) if float(e).is_integer() else e

    scale = float(scale)
    inv_scale = 1.0 / scale

    orig_shape = x_nchw.shape
    total = x_nchw.size
    flat = x_nchw.reshape(-1)

    main = (total // 128) * 128
    tail = total - main

    if main:
        main_in = flat[:main] if tail else flat
        main_out = _qat_pow_lane_aligned(
            main_in, exponent, scale, inv_scale, max_block_bytes
        )

    if tail:
        # TODO(synk): rare non-multiple-of-128 tail (<128 elems) handled with
        # plain XLA ops instead of a full-tensor padding copy.
        t = flat[main:].astype(jnp.float32)
        tail_out = _fake_quant(
            _pow_math(t, exponent, in_kernel=False), scale, inv_scale
        ).astype(flat.dtype)
        out = jnp.concatenate([main_out, tail_out]) if main else tail_out
    else:
        out = main_out

    return out.reshape(orig_shape)


if __name__ == "__main__":
    key = jax.random.PRNGKey(0)
    # NCHW input, small shapes (2048 elements, lane-aligned main path).
    B, C, H, W = 2, 4, 16, 16
    x = jax.random.normal(key, (B, C, H, W), dtype=jnp.float32)

    scale = 0.05  # deterministic fake-quant scale "parameter"
    s32 = jnp.float32(scale)
    inv32 = jnp.float32(1.0 / scale)

    # exponent == 2: FloatFunctional.mul(input, input) hot path
    out2 = jax.block_until_ready(qat_pow(x, 2, scale))
    ref2 = jnp.clip(jnp.round((x * x) * inv32), -128.0, 127.0) * s32
    assert out2.shape == x.shape
    assert jnp.allclose(out2, ref2, atol=1e-6), "exponent=2 mismatch vs reference"

    # exponent == 3: SegmentLUT(pow) path (exact integer power)
    out3 = jax.block_until_ready(qat_pow(x, 3, scale))
    ref3 = jnp.clip(jnp.round((x * x * x) * inv32), -128.0, 127.0) * s32
    assert jnp.allclose(out3, ref3, atol=1e-6), "exponent=3 mismatch vs reference"

    # Non-multiple-of-128 total size: kernel on the aligned prefix + XLA tail.
    key2 = jax.random.PRNGKey(1)
    x_odd = jax.random.normal(key2, (5, 100), dtype=jnp.float32)  # 500 elems
    out_odd = jax.block_until_ready(qat_pow(x_odd, 2, scale))
    ref_odd = jnp.clip(jnp.round((x_odd * x_odd) * inv32), -128.0, 127.0) * s32
    assert out_odd.shape == x_odd.shape
    assert jnp.allclose(out_odd, ref_odd, atol=1e-6), "tail-path mismatch vs reference"

    # Negative integer exponent path (reciprocal of integer power) — smoke test.
    out_m1 = jax.block_until_ready(qat_pow(x, -1, scale))
    assert out_m1.shape == x.shape
    assert bool(jnp.all(jnp.isfinite(out_m1))), "exponent=-1 produced non-finite values"

    print("KERNEL_OK")
</pallas_src>

<mosaic_0001>
module attributes {stable_mosaic.version = 11 : i64} {
  func.func @_pow_kernel(%arg0: i32, %arg1: memref<2x1024xf32, #tpu.memory_space<vmem>>, %arg2: memref<2x1024xf32, #tpu.memory_space<vmem>>) attributes {dimension_semantics = [#tpu.dimension_semantics<parallel>], iteration_bounds = array<i64: 1>, scalar_prefetch = 0 : i64, scratch_operands = 0 : i64, tpu.core_type = #tpu.core_type<tc>, window_params = [{transform_indices = @transform_0, window_bounds = array<i64: 2, 1024>}, {transform_indices = @transform_1, window_bounds = array<i64: 2, 1024>}]} {
    %c0 = arith.constant 0 : index
    %c0_0 = arith.constant 0 : index
    %0 = vector.load %arg1[%c0, %c0_0] : memref<2x1024xf32, #tpu.memory_space<vmem>>, vector<2x1024xf32>
    %1 = arith.mulf %0, %0 : vector<2x1024xf32>
    %cst = arith.constant 2.000000e+01 : f32
    %2 = vector.broadcast %cst : f32 to vector<2x1024xf32>
    %3 = arith.mulf %1, %2 : vector<2x1024xf32>
    %4 = math.roundeven %3 : vector<2x1024xf32>
    %cst_1 = arith.constant -1.280000e+02 : f32
    %cst_2 = arith.constant 1.270000e+02 : f32
    %5 = vector.broadcast %cst_1 : f32 to vector<2x1024xf32>
    %6 = arith.maximumf %5, %4 : vector<2x1024xf32>
    %7 = vector.broadcast %cst_2 : f32 to vector<2x1024xf32>
    %8 = arith.minimumf %7, %6 : vector<2x1024xf32>
    %cst_3 = arith.constant 5.000000e-02 : f32
    %9 = vector.broadcast %cst_3 : f32 to vector<2x1024xf32>
    %10 = arith.mulf %8, %9 : vector<2x1024xf32>
    %c0_4 = arith.constant 0 : index
    %c0_5 = arith.constant 0 : index
    %11 = vector.load %arg2[%c0_4, %c0_5] : memref<2x1024xf32, #tpu.memory_space<vmem>>, vector<2x1024xf32>
    tpu.vector_store %arg2[%c0_4, %c0_5], %10 {strides = array<i32>} : memref<2x1024xf32, #tpu.memory_space<vmem>>, vector<2x1024xf32>,
    return
  }
  func.func @transform_0(%arg0: i32) -> (i32, i32) {
    %c0_i32 = arith.constant 0 : i32
    %c0_i32_0 = arith.constant 0 : i32
    return %arg0, %c0_i32 : i32, i32
  }
  func.func @transform_1(%arg0: i32) -> (i32, i32) {
    %c0_i32 = arith.constant 0 : i32
    %c0_i32_0 = arith.constant 0 : i32
    return %arg0, %c0_i32 : i32, i32
  }
}

</mosaic_0001>

<llo_original>
// kernel: tpu_custom_call.1
$region0: #{tpu_custom_call.1}
  #allocation0 [shape = 'u32[]', space=smem, size = 0x4, offset = 0x4, fixed_abs, tag = 'smem constant byte address 0x4 - core index']
  #allocation1 [shape = 'u32[144,128]{1,0:T(1,128)}', space=vmem, size = 0x12000, scoped, tag = 'internal scratch']
  %s0 = inlined_call_operand.hbm [shape: f32[2,1024], index: 0, kind: input, shape index: {}]
  %s1 = inlined_call_operand.hbm [shape: f32[2,1024], index: 1, kind: output, shape index: {}]
  %s2 = sld [smem:[#allocation0]]
  $region18: #{tpu_custom_call.1} parent=0
    _
  %s4 = ssub.s32 1, %s2
  %s5 = scalar_select 0, %s4, %s2
  $region1: #{tpu_custom_call.1} parent=0
    #allocation2 [shape = 'u8[8192]{0}', space=vmem, size = 0x2000, scoped, tag = 'input window, operand 0, single buffered']
    #allocation3 [shape = 's32[1]{0}', space=sflag, size = 0x4, scoped, tag = 'scoped memory for tpu_custom_call.1']
    #allocation4 [shape = 's32[1]{0}', space=sflag, size = 0x4, scoped, tag = 'scoped memory for tpu_custom_call.1']
    #allocation5 [shape = 'u8[8192]{0}', space=vmem, size = 0x2000, scoped, tag = 'output window, operand 0, single buffered']
    %6 = vsyncpa [#allocation3], 0
    %7 = vsyncpa [#allocation4], 0
    // Predicated region
    $region2: #{tpu_custom_call.1} parent=1 // pred_check
      _
    $region3: #{tpu_custom_call.1} parent=1 // pred_check_branch
      %9 = sbr.rel (0) target = $region5
    $region4: #{tpu_custom_call.1} parent=1 // pred_region
      %s11 = ssub.s32 256, 256
      %12 = vsyncadd [#allocation3], %s11
      %s14 = sshll.u32 [#allocation2], 4
      %s15 = int_to_ptr.vmem [resolvable:$true] %s14
      %17 = dma.hbm_to_vmem [thread:$0]  %s0, 256, %s15, [#allocation3]
    $region5: #{tpu_custom_call.1} parent=1 // pred_fallthru
      _
    // Predicated region
    $region6: #{tpu_custom_call.1} parent=1 // pred_check
      _
    $region7: #{tpu_custom_call.1} parent=1 // pred_check_branch
      %19 = sbr.rel (0) target = $region9
    $region8: #{tpu_custom_call.1} parent=1 // pred_region
      %20 = dma.done [#allocation3], 256
    $region9: #{tpu_custom_call.1} parent=1 // pred_fallthru
      _
    %v21 = vld [vmem:[#allocation2] sm:$0xff]
    %v22 = vld [vmem:[#allocation2 + $0x8] sm:$0xff]
    %v23 = vmul.f32 %v21, %v21
    %v24 = vmul.f32 %v22, %v22
    %v25 = vmul.f32 %v23, 20.0
    %v26 = vmul.f32 %v24, 20.0
    %v27 = vround.ne.pseudo %v25
    %v28 = vround.ne.pseudo %v26
    %v29 = vmax.f32 %v27, -128.0
    %v30 = vmax.f32 %v28, -128.0
    %v31 = vmin.f32 %v29, 127.0
    %v32 = vmin.f32 %v30, 127.0
    %v33 = vmul.f32 %v31, 0.05
    %v34 = vmul.f32 %v32, 0.05
    %35 = vst [vmem:[#allocation5] sm:$0xff] %v33
    %36 = vst [vmem:[#allocation5 + $0x8] sm:$0xff] %v34
    // Predicated region
    $region10: #{tpu_custom_call.1} parent=1 // pred_check
      _
    $region11: #{tpu_custom_call.1} parent=1 // pred_check_branch
      %38 = sbr.rel (0) target = $region13
    $region12: #{tpu_custom_call.1} parent=1 // pred_region
      %s40 = ssub.s32 256, 256
      %41 = vsyncadd [#allocation4], %s40
      %s43 = sshll.u32 [#allocation5], 4
      %s44 = int_to_ptr.vmem [resolvable:$true] %s43
      %46 = dma.vmem_to_hbm [thread:$0]  %s44, 256, %s1, [#allocation4]
    $region13: #{tpu_custom_call.1} parent=1 // pred_fallthru
      _
    // Predicated region
    $region14: #{tpu_custom_call.1} parent=1 // pred_check
      _
    $region15: #{tpu_custom_call.1} parent=1 // pred_check_branch
      %48 = sbr.rel (0) target = $region17
    $region16: #{tpu_custom_call.1} parent=1 // pred_region
      %49 = dma.done [#allocation4], 256
    $region17: #{tpu_custom_call.1} parent=1 // pred_fallthru
      _
    %50 = vsyncpa [#allocation3], 1
    %51 = vsyncpa [#allocation4], 1

</llo_original>
